<compile_context>
chip_gen: v5e
topology: v5e:2x2
jax: 0.10.0
libtpu: 0.0.40
codegen_flags: <defaults>
</compile_context>

<pallas_src>
import functools

import jax
import jax.numpy as jnp
from jax import lax
from jax.experimental import pallas as pl
from jax.experimental.pallas import tpu as pltpu


def _residual_block_kernel(x_ref, w1_ref, b1_ref, w2_ref, b2_ref, out_ref,
                           taps_ref, *, H, W, C, C_pad, b_blk):
    # x_ref  : (b_blk, C, H*W)   images, channels on sublanes, spatial on lanes
    # w*_ref : (C, 9*C_pad)      column (ky*3+kx)*C_pad + i = W_oihw[o, i, ky, kx]
    # b*_ref : (C, 1)            f32
    # taps_ref: (9*C_pad, H*W)   VMEM scratch holding the 9 stacked shifted taps
    HW = H * W

    # ---- hoisted once per grid step (shared by both convs and all images) ----
    col = lax.broadcasted_iota(jnp.int32, (1, HW), 1) % W
    first_col = col == 0
    last_col = col == (W - 1)

    w1 = w1_ref[...]
    w2 = w2_ref[...]
    b1 = b1_ref[...].astype(jnp.float32)
    b2 = b2_ref[...].astype(jnp.float32)

    if C_pad != C:
        # Pad rows of the tap stack are never written again; zero them once so
        # the (zero) weight columns multiplying them never see stale VMEM.
        taps_ref[...] = jnp.zeros_like(taps_ref)

    def build_taps(z):
        """Write the 9 circularly-shifted taps of z (C, HW) into taps_ref."""
        # W wrap: a lane roll of the flat H*W axis is exact except at the row
        # boundary, where a second roll (offset by +/-W) supplies the wrap.
        left = jnp.where(first_col,
                         pltpu.roll(z, (1 - W) % HW, axis=1),
                         pltpu.roll(z, 1, axis=1))
        right = jnp.where(last_col,
                          pltpu.roll(z, W - 1, axis=1),
                          pltpu.roll(z, HW - 1, axis=1))
        cols = (left, z, right)
        for ky in range(3):
            srow = ((1 - ky) * W) % HW            # exact circular H shift
            for kx in range(3):
                tap = cols[kx] if srow == 0 else pltpu.roll(cols[kx], srow, axis=1)
                k = ky * 3 + kx
                taps_ref[k * C_pad:k * C_pad + C, :] = tap

    def conv3x3(z, w, b):
        build_taps(z)
        # ONE (C, 9*C_pad) @ (9*C_pad, HW) MXU contraction per conv.
        return jnp.dot(w, taps_ref[...], preferred_element_type=jnp.float32) + b

    for bi in range(b_blk):                        # unrolled; images independent
        x = x_ref[bi]                              # (C, HW)
        # conv1 + ReLU (cast back to input dtype so bf16 inputs keep the MXU
        # in bf16 on v6e/v7x; accumulation stays f32 either way).
        y1 = jnp.maximum(conv3x3(x, w1, b1), 0.0).astype(x.dtype)
        # conv2 + ReLU + residual (residual read from the same input value).
        y2 = jnp.maximum(conv3x3(y1, w2, b2), 0.0)
        out_ref[bi] = (y2 + x.astype(jnp.float32)).astype(out_ref.dtype)


def residual_block_pallas(x_nchw, w1_oihw, b1, w2_oihw, b2):
    """x_nchw: (B, C, H, W); weights in PyTorch OIHW layout; biases (C,)."""
    B, C, H, W = x_nchw.shape
    HW = H * W
    C_pad = ((C + 7) // 8) * 8                     # 8-sublane-aligned tap slots

    x_flat = x_nchw.reshape(B, C, HW)              # free reshape (W fastest)

    def prep_w(w_oihw):
        # OIHW (Cout, Cin, 3, 3) -> (Cout, 3, 3, Cin), pad Cin to C_pad with
        # zeros, flatten to (Cout, 9*C_pad).  Column (ky*3+kx)*C_pad + i
        # matches the taps_ref row layout.  Cast to x dtype (bf16 on bf16 in).
        w = jnp.transpose(w_oihw, (0, 2, 3, 1))
        if C_pad != C:
            w = jnp.pad(w, ((0, 0), (0, 0), (0, 0), (0, C_pad - C)))
        return w.reshape(C, 9 * C_pad).astype(x_nchw.dtype)

    w1_t = prep_w(w1_oihw)
    w2_t = prep_w(w2_oihw)
    b1_r = b1.reshape(C, 1).astype(jnp.float32)
    b2_r = b2.reshape(C, 1).astype(jnp.float32)

    # Grid: at most two steps.  One step for small batches (per-step overhead
    # dominates the tiny per-image work on single-TC v5e/v6e); two steps for
    # larger even batches so both v7x TensorCores get a batch block.
    if B >= 4 and B % 2 == 0:
        num_steps = 2
    else:
        num_steps = 1
    b_blk = B // num_steps

    kernel = functools.partial(_residual_block_kernel,
                               H=H, W=W, C=C, C_pad=C_pad, b_blk=b_blk)

    itemsize = jnp.dtype(x_nchw.dtype).itemsize
    flops = 2 * B * HW * C * C * 9 * 2                       # two 3x3 convs
    bytes_accessed = (2 * B * C * HW) * itemsize + (2 * 9 * C_pad * C + 2 * C) * 4

    out_flat = pl.pallas_call(
        kernel,
        out_shape=jax.ShapeDtypeStruct((B, C, HW), x_nchw.dtype),
        grid_spec=pltpu.PrefetchScalarGridSpec(
            num_scalar_prefetch=0,
            grid=(num_steps,),
            in_specs=[
                pl.BlockSpec((b_blk, C, HW), lambda g: (g, 0, 0)),
                pl.BlockSpec((C, 9 * C_pad), lambda g: (0, 0)),
                pl.BlockSpec((C, 1), lambda g: (0, 0)),
                pl.BlockSpec((C, 9 * C_pad), lambda g: (0, 0)),
                pl.BlockSpec((C, 1), lambda g: (0, 0)),
            ],
            out_specs=pl.BlockSpec((b_blk, C, HW), lambda g: (g, 0, 0)),
            scratch_shapes=[pltpu.VMEM((9 * C_pad, HW), x_nchw.dtype)],
        ),
        compiler_params=pltpu.CompilerParams(
            dimension_semantics=("parallel",)),
        cost_estimate=pl.CostEstimate(
            flops=flops, transcendentals=0, bytes_accessed=bytes_accessed),
    )(x_flat, w1_t, b1_r, w2_t, b2_r)

    return out_flat.reshape(B, C, H, W)                      # free reshape back


def orthogonal_conv_init(key, out_c, in_c, kh, kw, std):
    """Mirror torch.nn.init.orthogonal_(weight, std) on an OIHW conv weight."""
    rows, cols = out_c, in_c * kh * kw
    n, m = max(rows, cols), min(rows, cols)
    a = jax.random.normal(key, (n, m), jnp.float32)
    q, r = jnp.linalg.qr(a)
    q = q * jnp.sign(jnp.diagonal(r))        # make decomposition deterministic
    if rows < cols:
        q = q.T
    return (std * q).reshape(out_c, in_c, kh, kw).astype(jnp.float32)


def _reference_forward(x, w1, b1, w2, b2):
    """Pure-JAX NCHW reference (matches PyTorch Conv2d circular-pad semantics)."""
    def conv(z, w, b):
        zp = jnp.pad(z, ((0, 0), (0, 0), (1, 1), (1, 1)), mode="wrap")
        y = lax.conv_general_dilated(
            zp, w, window_strides=(1, 1), padding="VALID",
            dimension_numbers=("NCHW", "OIHW", "NCHW"))
        return y + b.reshape(1, -1, 1, 1)
    y = jnp.maximum(conv(x, w1, b1), 0.0)
    y = jnp.maximum(conv(y, w2, b2), 0.0)
    return y + x


if __name__ == "__main__":
    B, C, H, W = 2, 4, 16, 16
    key = jax.random.PRNGKey(0)
    kx, k1, k2 = jax.random.split(key, 3)

    x = jax.random.normal(kx, (B, C, H, W), jnp.float32)

    std = jnp.sqrt(2.0)
    w1 = orthogonal_conv_init(k1, C, C, 3, 3, std)
    b1 = jnp.zeros((C,), jnp.float32)            # layer_init uses bias_const=0
    w2 = orthogonal_conv_init(k2, C, C, 3, 3, std)
    b2 = jnp.zeros((C,), jnp.float32)

    out = residual_block_pallas(x, w1, b1, w2, b2)
    out = jax.block_until_ready(out)

    ref = _reference_forward(x, w1, b1, w2, b2)
    assert out.shape == (B, C, H, W)
    assert jnp.allclose(out, ref, atol=1e-4, rtol=1e-4)

    print("KERNEL_OK")
</pallas_src>

<mosaic_0001>
module attributes {stable_mosaic.version = 11 : i64} {
  func.func @_residual_block_kernel(%arg0: i32, %arg1: memref<2x4x256xf32, #tpu.memory_space<vmem>>, %arg2: memref<4x72xf32, #tpu.memory_space<vmem>>, %arg3: memref<4x1xf32, #tpu.memory_space<vmem>>, %arg4: memref<4x72xf32, #tpu.memory_space<vmem>>, %arg5: memref<4x1xf32, #tpu.memory_space<vmem>>, %arg6: memref<2x4x256xf32, #tpu.memory_space<vmem>>, %arg7: memref<72x256xf32, #tpu.memory_space<vmem>>) attributes {dimension_semantics = [#tpu.dimension_semantics<parallel>], iteration_bounds = array<i64: 1>, scalar_prefetch = 0 : i64, scratch_operands = 1 : i64, tpu.core_type = #tpu.core_type<tc>, window_params = [{transform_indices = @transform_0, window_bounds = array<i64: 2, 4, 256>}, {pipeline_mode = #tpu.pipeline_mode<synchronous>, transform_indices = @transform_1, window_bounds = array<i64: 4, 72>}, {pipeline_mode = #tpu.pipeline_mode<synchronous>, transform_indices = @transform_2, window_bounds = array<i64: 4, 1>}, {pipeline_mode = #tpu.pipeline_mode<synchronous>, transform_indices = @transform_3, window_bounds = array<i64: 4, 72>}, {pipeline_mode = #tpu.pipeline_mode<synchronous>, transform_indices = @transform_4, window_bounds = array<i64: 4, 1>}, {transform_indices = @transform_5, window_bounds = array<i64: 2, 4, 256>}]} {
    %0 = tpu.iota {dimensions = array<i32: 1>} : vector<1x256xi32>
    %c16_i32 = arith.constant 16 : i32
    %c0_i32 = arith.constant 0 : i32
    %1 = arith.cmpi eq, %c16_i32, %c0_i32 : i32
    %c1_i32 = arith.constant 1 : i32
    %2 = arith.select %1, %c1_i32, %c16_i32 : i32
    %3 = vector.broadcast %2 : i32 to vector<1x256xi32>
    %4 = arith.remsi %0, %3 : vector<1x256xi32>
    %c0_i32_0 = arith.constant 0 : i32
    %5 = vector.broadcast %c0_i32_0 : i32 to vector<1x256xi32>
    %6 = arith.cmpi ne, %4, %5 : vector<1x256xi32>
    %c0_i32_1 = arith.constant 0 : i32
    %7 = vector.broadcast %c0_i32_1 : i32 to vector<1x256xi32>
    %8 = arith.cmpi slt, %4, %7 : vector<1x256xi32>
    %c0_i32_2 = arith.constant 0 : i32
    %9 = arith.cmpi slt, %2, %c0_i32_2 : i32
    %10 = vector.broadcast %9 : i1 to vector<1x256xi1>
    %11 = vector.broadcast %10 : vector<1x256xi1> to vector<1x256xi1>
    %12 = arith.xori %8, %11 : vector<1x256xi1>
    %13 = arith.andi %12, %6 : vector<1x256xi1>
    %14 = vector.broadcast %2 : i32 to vector<1x256xi32>
    %15 = arith.addi %4, %14 : vector<1x256xi32>
    %16 = arith.select %13, %15, %4 : vector<1x256xi1>, vector<1x256xi32>
    %c0_i32_3 = arith.constant 0 : i32
    %17 = vector.broadcast %c0_i32_3 : i32 to vector<1x256xi32>
    %18 = arith.cmpi eq, %16, %17 : vector<1x256xi32>
    %c15_i32 = arith.constant 15 : i32
    %19 = vector.broadcast %c15_i32 : i32 to vector<1x256xi32>
    %20 = arith.cmpi eq, %16, %19 : vector<1x256xi32>
    %c0 = arith.constant 0 : index
    %c0_4 = arith.constant 0 : index
    %21 = vector.load %arg2[%c0, %c0_4] : memref<4x72xf32, #tpu.memory_space<vmem>>, vector<4x72xf32>
    %c0_5 = arith.constant 0 : index
    %c0_6 = arith.constant 0 : index
    %22 = vector.load %arg4[%c0_5, %c0_6] : memref<4x72xf32, #tpu.memory_space<vmem>>, vector<4x72xf32>
    %c0_7 = arith.constant 0 : index
    %c0_8 = arith.constant 0 : index
    %23 = vector.load %arg3[%c0_7, %c0_8] : memref<4x1xf32, #tpu.memory_space<vmem>>, vector<4x1xf32>
    %c0_9 = arith.constant 0 : index
    %c0_10 = arith.constant 0 : index
    %24 = vector.load %arg5[%c0_9, %c0_10] : memref<4x1xf32, #tpu.memory_space<vmem>>, vector<4x1xf32>
    %cst = arith.constant 0.000000e+00 : f32
    %25 = vector.broadcast %cst : f32 to vector<72x256xf32>
    %c0_11 = arith.constant 0 : index
    %c0_12 = arith.constant 0 : index
    %26 = vector.load %arg7[%c0_11, %c0_12] : memref<72x256xf32, #tpu.memory_space<vmem>>, vector<72x256xf32>
    tpu.vector_store %arg7[%c0_11, %c0_12], %25 {strides = array<i32>} : memref<72x256xf32, #tpu.memory_space<vmem>>, vector<72x256xf32>,
    %c0_13 = arith.constant 0 : index
    %c0_14 = arith.constant 0 : index
    %c0_15 = arith.constant 0 : index
    %27 = vector.load %arg1[%c0_13, %c0_14, %c0_15] : memref<2x4x256xf32, #tpu.memory_space<vmem>>, vector<1x4x256xf32>
    %28 = vector.shape_cast %27 : vector<1x4x256xf32> to vector<4x256xf32>
    %c241_i32 = arith.constant 241 : i32
    %29 = tpu.dynamic_rotate %28 by %c241_i32 dim 1 : vector<4x256xf32>, i32 -> vector<4x256xf32>
    %c1_i32_16 = arith.constant 1 : i32
    %30 = tpu.dynamic_rotate %28 by %c1_i32_16 dim 1 : vector<4x256xf32>, i32 -> vector<4x256xf32>
    %31 = vector.shape_cast %18 : vector<1x256xi1> to vector<1x256xi1>
    %32 = vector.broadcast %31 : vector<1x256xi1> to vector<4x256xi1>
    %33 = arith.select %32, %29, %30 : vector<4x256xi1>, vector<4x256xf32>
    %c15_i32_17 = arith.constant 15 : i32
    %34 = tpu.dynamic_rotate %28 by %c15_i32_17 dim 1 : vector<4x256xf32>, i32 -> vector<4x256xf32>
    %c255_i32 = arith.constant 255 : i32
    %35 = tpu.dynamic_rotate %28 by %c255_i32 dim 1 : vector<4x256xf32>, i32 -> vector<4x256xf32>
    %36 = vector.shape_cast %20 : vector<1x256xi1> to vector<1x256xi1>
    %37 = vector.broadcast %36 : vector<1x256xi1> to vector<4x256xi1>
    %38 = arith.select %37, %34, %35 : vector<4x256xi1>, vector<4x256xf32>
    %c16_i32_18 = arith.constant 16 : i32
    %39 = tpu.dynamic_rotate %33 by %c16_i32_18 dim 1 : vector<4x256xf32>, i32 -> vector<4x256xf32>
    %c0_19 = arith.constant 0 : index
    %c0_20 = arith.constant 0 : index
    %40 = vector.load %arg7[%c0_19, %c0_20] : memref<72x256xf32, #tpu.memory_space<vmem>>, vector<4x256xf32>
    tpu.vector_store %arg7[%c0_19, %c0_20], %39 {strides = array<i32>} : memref<72x256xf32, #tpu.memory_space<vmem>>, vector<4x256xf32>,
    %c16_i32_21 = arith.constant 16 : i32
    %41 = tpu.dynamic_rotate %28 by %c16_i32_21 dim 1 : vector<4x256xf32>, i32 -> vector<4x256xf32>
    %c8 = arith.constant 8 : index
    %c0_22 = arith.constant 0 : index
    %42 = vector.load %arg7[%c8, %c0_22] : memref<72x256xf32, #tpu.memory_space<vmem>>, vector<4x256xf32>
    tpu.vector_store %arg7[%c8, %c0_22], %41 {strides = array<i32>} : memref<72x256xf32, #tpu.memory_space<vmem>>, vector<4x256xf32>,
    %c16_i32_23 = arith.constant 16 : i32
    %43 = tpu.dynamic_rotate %38 by %c16_i32_23 dim 1 : vector<4x256xf32>, i32 -> vector<4x256xf32>
    %c16 = arith.constant 16 : index
    %c0_24 = arith.constant 0 : index
    %44 = vector.load %arg7[%c16, %c0_24] : memref<72x256xf32, #tpu.memory_space<vmem>>, vector<4x256xf32>
    tpu.vector_store %arg7[%c16, %c0_24], %43 {strides = array<i32>} : memref<72x256xf32, #tpu.memory_space<vmem>>, vector<4x256xf32>,
    %c24 = arith.constant 24 : index
    %c0_25 = arith.constant 0 : index
    %45 = vector.load %arg7[%c24, %c0_25] : memref<72x256xf32, #tpu.memory_space<vmem>>, vector<4x256xf32>
    tpu.vector_store %arg7[%c24, %c0_25], %33 {strides = array<i32>} : memref<72x256xf32, #tpu.memory_space<vmem>>, vector<4x256xf32>,
    %c32 = arith.constant 32 : index
    %c0_26 = arith.constant 0 : index
    %46 = vector.load %arg7[%c32, %c0_26] : memref<72x256xf32, #tpu.memory_space<vmem>>, vector<4x256xf32>
    tpu.vector_store %arg7[%c32, %c0_26], %28 {strides = array<i32>} : memref<72x256xf32, #tpu.memory_space<vmem>>, vector<4x256xf32>,
    %c40 = arith.constant 40 : index
    %c0_27 = arith.constant 0 : index
    %47 = vector.load %arg7[%c40, %c0_27] : memref<72x256xf32, #tpu.memory_space<vmem>>, vector<4x256xf32>
    tpu.vector_store %arg7[%c40, %c0_27], %38 {strides = array<i32>} : memref<72x256xf32, #tpu.memory_space<vmem>>, vector<4x256xf32>,
    %c240_i32 = arith.constant 240 : i32
    %48 = tpu.dynamic_rotate %33 by %c240_i32 dim 1 : vector<4x256xf32>, i32 -> vector<4x256xf32>
    %c48 = arith.constant 48 : index
    %c0_28 = arith.constant 0 : index
    %49 = vector.load %arg7[%c48, %c0_28] : memref<72x256xf32, #tpu.memory_space<vmem>>, vector<4x256xf32>
    tpu.vector_store %arg7[%c48, %c0_28], %48 {strides = array<i32>} : memref<72x256xf32, #tpu.memory_space<vmem>>, vector<4x256xf32>,
    %c240_i32_29 = arith.constant 240 : i32
    %50 = tpu.dynamic_rotate %28 by %c240_i32_29 dim 1 : vector<4x256xf32>, i32 -> vector<4x256xf32>
    %c56 = arith.constant 56 : index
    %c0_30 = arith.constant 0 : index
    %51 = vector.load %arg7[%c56, %c0_30] : memref<72x256xf32, #tpu.memory_space<vmem>>, vector<4x256xf32>
    tpu.vector_store %arg7[%c56, %c0_30], %50 {strides = array<i32>} : memref<72x256xf32, #tpu.memory_space<vmem>>, vector<4x256xf32>,
    %c240_i32_31 = arith.constant 240 : i32
    %52 = tpu.dynamic_rotate %38 by %c240_i32_31 dim 1 : vector<4x256xf32>, i32 -> vector<4x256xf32>
    %c64 = arith.constant 64 : index
    %c0_32 = arith.constant 0 : index
    %53 = vector.load %arg7[%c64, %c0_32] : memref<72x256xf32, #tpu.memory_space<vmem>>, vector<4x256xf32>
    tpu.vector_store %arg7[%c64, %c0_32], %52 {strides = array<i32>} : memref<72x256xf32, #tpu.memory_space<vmem>>, vector<4x256xf32>,
    %c0_33 = arith.constant 0 : index
    %c0_34 = arith.constant 0 : index
    %54 = vector.load %arg7[%c0_33, %c0_34] : memref<72x256xf32, #tpu.memory_space<vmem>>, vector<72x256xf32>
    %cst_35 = arith.constant dense<0.000000e+00> : vector<4x256xf32>
    %55 = tpu.matmul %21, %54, %cst_35 {dimension_numbers = #tpu.dot_dimension_numbers<[1], [0], [0], [1], [0, 0, 1, 1], [], []>} : vector<4x72xf32>, vector<72x256xf32>, vector<4x256xf32> -> vector<4x256xf32>
    %56 = vector.broadcast %23 : vector<4x1xf32> to vector<4x256xf32>
    %57 = arith.addf %55, %56 : vector<4x256xf32>
    %cst_36 = arith.constant 0.000000e+00 : f32
    %58 = vector.broadcast %cst_36 : f32 to vector<4x256xf32>
    %59 = arith.maximumf %57, %58 : vector<4x256xf32>
    %c241_i32_37 = arith.constant 241 : i32
    %60 = tpu.dynamic_rotate %59 by %c241_i32_37 dim 1 : vector<4x256xf32>, i32 -> vector<4x256xf32>
    %c1_i32_38 = arith.constant 1 : i32
    %61 = tpu.dynamic_rotate %59 by %c1_i32_38 dim 1 : vector<4x256xf32>, i32 -> vector<4x256xf32>
    %62 = vector.shape_cast %18 : vector<1x256xi1> to vector<1x256xi1>
    %63 = vector.broadcast %62 : vector<1x256xi1> to vector<4x256xi1>
    %64 = arith.select %63, %60, %61 : vector<4x256xi1>, vector<4x256xf32>
    %c15_i32_39 = arith.constant 15 : i32
    %65 = tpu.dynamic_rotate %59 by %c15_i32_39 dim 1 : vector<4x256xf32>, i32 -> vector<4x256xf32>
    %c255_i32_40 = arith.constant 255 : i32
    %66 = tpu.dynamic_rotate %59 by %c255_i32_40 dim 1 : vector<4x256xf32>, i32 -> vector<4x256xf32>
    %67 = vector.shape_cast %20 : vector<1x256xi1> to vector<1x256xi1>
    %68 = vector.broadcast %67 : vector<1x256xi1> to vector<4x256xi1>
    %69 = arith.select %68, %65, %66 : vector<4x256xi1>, vector<4x256xf32>
    %c16_i32_41 = arith.constant 16 : i32
    %70 = tpu.dynamic_rotate %64 by %c16_i32_41 dim 1 : vector<4x256xf32>, i32 -> vector<4x256xf32>
    %c0_42 = arith.constant 0 : index
    %c0_43 = arith.constant 0 : index
    %71 = vector.load %arg7[%c0_42, %c0_43] : memref<72x256xf32, #tpu.memory_space<vmem>>, vector<4x256xf32>
    tpu.vector_store %arg7[%c0_42, %c0_43], %70 {strides = array<i32>} : memref<72x256xf32, #tpu.memory_space<vmem>>, vector<4x256xf32>,
    %c16_i32_44 = arith.constant 16 : i32
    %72 = tpu.dynamic_rotate %59 by %c16_i32_44 dim 1 : vector<4x256xf32>, i32 -> vector<4x256xf32>
    %c8_45 = arith.constant 8 : index
    %c0_46 = arith.constant 0 : index
    %73 = vector.load %arg7[%c8_45, %c0_46] : memref<72x256xf32, #tpu.memory_space<vmem>>, vector<4x256xf32>
    tpu.vector_store %arg7[%c8_45, %c0_46], %72 {strides = array<i32>} : memref<72x256xf32, #tpu.memory_space<vmem>>, vector<4x256xf32>,
    %c16_i32_47 = arith.constant 16 : i32
    %74 = tpu.dynamic_rotate %69 by %c16_i32_47 dim 1 : vector<4x256xf32>, i32 -> vector<4x256xf32>
    %c16_48 = arith.constant 16 : index
    %c0_49 = arith.constant 0 : index
    %75 = vector.load %arg7[%c16_48, %c0_49] : memref<72x256xf32, #tpu.memory_space<vmem>>, vector<4x256xf32>
    tpu.vector_store %arg7[%c16_48, %c0_49], %74 {strides = array<i32>} : memref<72x256xf32, #tpu.memory_space<vmem>>, vector<4x256xf32>,
    %c24_50 = arith.constant 24 : index
    %c0_51 = arith.constant 0 : index
    %76 = vector.load %arg7[%c24_50, %c0_51] : memref<72x256xf32, #tpu.memory_space<vmem>>, vector<4x256xf32>
    tpu.vector_store %arg7[%c24_50, %c0_51], %64 {strides = array<i32>} : memref<72x256xf32, #tpu.memory_space<vmem>>, vector<4x256xf32>,
    %c32_52 = arith.constant 32 : index
    %c0_53 = arith.constant 0 : index
    %77 = vector.load %arg7[%c32_52, %c0_53] : memref<72x256xf32, #tpu.memory_space<vmem>>, vector<4x256xf32>
    tpu.vector_store %arg7[%c32_52, %c0_53], %59 {strides = array<i32>} : memref<72x256xf32, #tpu.memory_space<vmem>>, vector<4x256xf32>,
    %c40_54 = arith.constant 40 : index
    %c0_55 = arith.constant 0 : index
    %78 = vector.load %arg7[%c40_54, %c0_55] : memref<72x256xf32, #tpu.memory_space<vmem>>, vector<4x256xf32>
    tpu.vector_store %arg7[%c40_54, %c0_55], %69 {strides = array<i32>} : memref<72x256xf32, #tpu.memory_space<vmem>>, vector<4x256xf32>,
    %c240_i32_56 = arith.constant 240 : i32
    %79 = tpu.dynamic_rotate %64 by %c240_i32_56 dim 1 : vector<4x256xf32>, i32 -> vector<4x256xf32>
    %c48_57 = arith.constant 48 : index
    %c0_58 = arith.constant 0 : index
    %80 = vector.load %arg7[%c48_57, %c0_58] : memref<72x256xf32, #tpu.memory_space<vmem>>, vector<4x256xf32>
    tpu.vector_store %arg7[%c48_57, %c0_58], %79 {strides = array<i32>} : memref<72x256xf32, #tpu.memory_space<vmem>>, vector<4x256xf32>,
    %c240_i32_59 = arith.constant 240 : i32
    %81 = tpu.dynamic_rotate %59 by %c240_i32_59 dim 1 : vector<4x256xf32>, i32 -> vector<4x256xf32>
    %c56_60 = arith.constant 56 : index
    %c0_61 = arith.constant 0 : index
    %82 = vector.load %arg7[%c56_60, %c0_61] : memref<72x256xf32, #tpu.memory_space<vmem>>, vector<4x256xf32>
    tpu.vector_store %arg7[%c56_60, %c0_61], %81 {strides = array<i32>} : memref<72x256xf32, #tpu.memory_space<vmem>>, vector<4x256xf32>,
    %c240_i32_62 = arith.constant 240 : i32
    %83 = tpu.dynamic_rotate %69 by %c240_i32_62 dim 1 : vector<4x256xf32>, i32 -> vector<4x256xf32>
    %c64_63 = arith.constant 64 : index
    %c0_64 = arith.constant 0 : index
    %84 = vector.load %arg7[%c64_63, %c0_64] : memref<72x256xf32, #tpu.memory_space<vmem>>, vector<4x256xf32>
    tpu.vector_store %arg7[%c64_63, %c0_64], %83 {strides = array<i32>} : memref<72x256xf32, #tpu.memory_space<vmem>>, vector<4x256xf32>,
    %c0_65 = arith.constant 0 : index
    %c0_66 = arith.constant 0 : index
    %85 = vector.load %arg7[%c0_65, %c0_66] : memref<72x256xf32, #tpu.memory_space<vmem>>, vector<72x256xf32>
    %cst_67 = arith.constant dense<0.000000e+00> : vector<4x256xf32>
    %86 = tpu.matmul %22, %85, %cst_67 {dimension_numbers = #tpu.dot_dimension_numbers<[1], [0], [0], [1], [0, 0, 1, 1], [], []>} : vector<4x72xf32>, vector<72x256xf32>, vector<4x256xf32> -> vector<4x256xf32>
    %87 = vector.broadcast %24 : vector<4x1xf32> to vector<4x256xf32>
    %88 = arith.addf %86, %87 : vector<4x256xf32>
    %cst_68 = arith.constant 0.000000e+00 : f32
    %89 = vector.broadcast %cst_68 : f32 to vector<4x256xf32>
    %90 = arith.maximumf %88, %89 : vector<4x256xf32>
    %91 = arith.addf %90, %28 : vector<4x256xf32>
    %c0_69 = arith.constant 0 : index
    %c0_70 = arith.constant 0 : index
    %c0_71 = arith.constant 0 : index
    %92 = vector.load %arg6[%c0_69, %c0_70, %c0_71] : memref<2x4x256xf32, #tpu.memory_space<vmem>>, vector<1x4x256xf32>
    %93 = vector.shape_cast %92 : vector<1x4x256xf32> to vector<4x256xf32>
    %94 = vector.shape_cast %91 : vector<4x256xf32> to vector<1x4x256xf32>
    tpu.vector_store %arg6[%c0_69, %c0_70, %c0_71], %94 {strides = array<i32>} : memref<2x4x256xf32, #tpu.memory_space<vmem>>, vector<1x4x256xf32>,
    %c1 = arith.constant 1 : index
    %c0_72 = arith.constant 0 : index
    %c0_73 = arith.constant 0 : index
    %95 = vector.load %arg1[%c1, %c0_72, %c0_73] : memref<2x4x256xf32, #tpu.memory_space<vmem>>, vector<1x4x256xf32>
    %96 = vector.shape_cast %95 : vector<1x4x256xf32> to vector<4x256xf32>
    %c241_i32_74 = arith.constant 241 : i32
    %97 = tpu.dynamic_rotate %96 by %c241_i32_74 dim 1 : vector<4x256xf32>, i32 -> vector<4x256xf32>
    %c1_i32_75 = arith.constant 1 : i32
    %98 = tpu.dynamic_rotate %96 by %c1_i32_75 dim 1 : vector<4x256xf32>, i32 -> vector<4x256xf32>
    %99 = vector.shape_cast %18 : vector<1x256xi1> to vector<1x256xi1>
    %100 = vector.broadcast %99 : vector<1x256xi1> to vector<4x256xi1>
    %101 = arith.select %100, %97, %98 : vector<4x256xi1>, vector<4x256xf32>
    %c15_i32_76 = arith.constant 15 : i32
    %102 = tpu.dynamic_rotate %96 by %c15_i32_76 dim 1 : vector<4x256xf32>, i32 -> vector<4x256xf32>
    %c255_i32_77 = arith.constant 255 : i32
    %103 = tpu.dynamic_rotate %96 by %c255_i32_77 dim 1 : vector<4x256xf32>, i32 -> vector<4x256xf32>
    %104 = vector.shape_cast %20 : vector<1x256xi1> to vector<1x256xi1>
    %105 = vector.broadcast %104 : vector<1x256xi1> to vector<4x256xi1>
    %106 = arith.select %105, %102, %103 : vector<4x256xi1>, vector<4x256xf32>
    %c16_i32_78 = arith.constant 16 : i32
    %107 = tpu.dynamic_rotate %101 by %c16_i32_78 dim 1 : vector<4x256xf32>, i32 -> vector<4x256xf32>
    %c0_79 = arith.constant 0 : index
    %c0_80 = arith.constant 0 : index
    %108 = vector.load %arg7[%c0_79, %c0_80] : memref<72x256xf32, #tpu.memory_space<vmem>>, vector<4x256xf32>
    tpu.vector_store %arg7[%c0_79, %c0_80], %107 {strides = array<i32>} : memref<72x256xf32, #tpu.memory_space<vmem>>, vector<4x256xf32>,
    %c16_i32_81 = arith.constant 16 : i32
    %109 = tpu.dynamic_rotate %96 by %c16_i32_81 dim 1 : vector<4x256xf32>, i32 -> vector<4x256xf32>
    %c8_82 = arith.constant 8 : index
    %c0_83 = arith.constant 0 : index
    %110 = vector.load %arg7[%c8_82, %c0_83] : memref<72x256xf32, #tpu.memory_space<vmem>>, vector<4x256xf32>
    tpu.vector_store %arg7[%c8_82, %c0_83], %109 {strides = array<i32>} : memref<72x256xf32, #tpu.memory_space<vmem>>, vector<4x256xf32>,
    %c16_i32_84 = arith.constant 16 : i32
    %111 = tpu.dynamic_rotate %106 by %c16_i32_84 dim 1 : vector<4x256xf32>, i32 -> vector<4x256xf32>
    %c16_85 = arith.constant 16 : index
    %c0_86 = arith.constant 0 : index
    %112 = vector.load %arg7[%c16_85, %c0_86] : memref<72x256xf32, #tpu.memory_space<vmem>>, vector<4x256xf32>
    tpu.vector_store %arg7[%c16_85, %c0_86], %111 {strides = array<i32>} : memref<72x256xf32, #tpu.memory_space<vmem>>, vector<4x256xf32>,
    %c24_87 = arith.constant 24 : index
    %c0_88 = arith.constant 0 : index
    %113 = vector.load %arg7[%c24_87, %c0_88] : memref<72x256xf32, #tpu.memory_space<vmem>>, vector<4x256xf32>
    tpu.vector_store %arg7[%c24_87, %c0_88], %101 {strides = array<i32>} : memref<72x256xf32, #tpu.memory_space<vmem>>, vector<4x256xf32>,
    %c32_89 = arith.constant 32 : index
    %c0_90 = arith.constant 0 : index
    %114 = vector.load %arg7[%c32_89, %c0_90] : memref<72x256xf32, #tpu.memory_space<vmem>>, vector<4x256xf32>
    tpu.vector_store %arg7[%c32_89, %c0_90], %96 {strides = array<i32>} : memref<72x256xf32, #tpu.memory_space<vmem>>, vector<4x256xf32>,
    %c40_91 = arith.constant 40 : index
    %c0_92 = arith.constant 0 : index
    %115 = vector.load %arg7[%c40_91, %c0_92] : memref<72x256xf32, #tpu.memory_space<vmem>>, vector<4x256xf32>
    tpu.vector_store %arg7[%c40_91, %c0_92], %106 {strides = array<i32>} : memref<72x256xf32, #tpu.memory_space<vmem>>, vector<4x256xf32>,
    %c240_i32_93 = arith.constant 240 : i32
    %116 = tpu.dynamic_rotate %101 by %c240_i32_93 dim 1 : vector<4x256xf32>, i32 -> vector<4x256xf32>
    %c48_94 = arith.constant 48 : index
    %c0_95 = arith.constant 0 : index
    %117 = vector.load %arg7[%c48_94, %c0_95] : memref<72x256xf32, #tpu.memory_space<vmem>>, vector<4x256xf32>
    tpu.vector_store %arg7[%c48_94, %c0_95], %116 {strides = array<i32>} : memref<72x256xf32, #tpu.memory_space<vmem>>, vector<4x256xf32>,
    %c240_i32_96 = arith.constant 240 : i32
    %118 = tpu.dynamic_rotate %96 by %c240_i32_96 dim 1 : vector<4x256xf32>, i32 -> vector<4x256xf32>
    %c56_97 = arith.constant 56 : index
    %c0_98 = arith.constant 0 : index
    %119 = vector.load %arg7[%c56_97, %c0_98] : memref<72x256xf32, #tpu.memory_space<vmem>>, vector<4x256xf32>
    tpu.vector_store %arg7[%c56_97, %c0_98], %118 {strides = array<i32>} : memref<72x256xf32, #tpu.memory_space<vmem>>, vector<4x256xf32>,
    %c240_i32_99 = arith.constant 240 : i32
    %120 = tpu.dynamic_rotate %106 by %c240_i32_99 dim 1 : vector<4x256xf32>, i32 -> vector<4x256xf32>
    %c64_100 = arith.constant 64 : index
    %c0_101 = arith.constant 0 : index
    %121 = vector.load %arg7[%c64_100, %c0_101] : memref<72x256xf32, #tpu.memory_space<vmem>>, vector<4x256xf32>
    tpu.vector_store %arg7[%c64_100, %c0_101], %120 {strides = array<i32>} : memref<72x256xf32, #tpu.memory_space<vmem>>, vector<4x256xf32>,
    %c0_102 = arith.constant 0 : index
    %c0_103 = arith.constant 0 : index
    %122 = vector.load %arg7[%c0_102, %c0_103] : memref<72x256xf32, #tpu.memory_space<vmem>>, vector<72x256xf32>
    %cst_104 = arith.constant dense<0.000000e+00> : vector<4x256xf32>
    %123 = tpu.matmul %21, %122, %cst_104 {dimension_numbers = #tpu.dot_dimension_numbers<[1], [0], [0], [1], [0, 0, 1, 1], [], []>} : vector<4x72xf32>, vector<72x256xf32>, vector<4x256xf32> -> vector<4x256xf32>
    %124 = vector.broadcast %23 : vector<4x1xf32> to vector<4x256xf32>
    %125 = arith.addf %123, %124 : vector<4x256xf32>
    %cst_105 = arith.constant 0.000000e+00 : f32
    %126 = vector.broadcast %cst_105 : f32 to vector<4x256xf32>
    %127 = arith.maximumf %125, %126 : vector<4x256xf32>
    %c241_i32_106 = arith.constant 241 : i32
    %128 = tpu.dynamic_rotate %127 by %c241_i32_106 dim 1 : vector<4x256xf32>, i32 -> vector<4x256xf32>
    %c1_i32_107 = arith.constant 1 : i32
    %129 = tpu.dynamic_rotate %127 by %c1_i32_107 dim 1 : vector<4x256xf32>, i32 -> vector<4x256xf32>
    %130 = vector.shape_cast %18 : vector<1x256xi1> to vector<1x256xi1>
    %131 = vector.broadcast %130 : vector<1x256xi1> to vector<4x256xi1>
    %132 = arith.select %131, %128, %129 : vector<4x256xi1>, vector<4x256xf32>
    %c15_i32_108 = arith.constant 15 : i32
    %133 = tpu.dynamic_rotate %127 by %c15_i32_108 dim 1 : vector<4x256xf32>, i32 -> vector<4x256xf32>
    %c255_i32_109 = arith.constant 255 : i32
    %134 = tpu.dynamic_rotate %127 by %c255_i32_109 dim 1 : vector<4x256xf32>, i32 -> vector<4x256xf32>
    %135 = vector.shape_cast %20 : vector<1x256xi1> to vector<1x256xi1>
    %136 = vector.broadcast %135 : vector<1x256xi1> to vector<4x256xi1>
    %137 = arith.select %136, %133, %134 : vector<4x256xi1>, vector<4x256xf32>
    %c16_i32_110 = arith.constant 16 : i32
    %138 = tpu.dynamic_rotate %132 by %c16_i32_110 dim 1 : vector<4x256xf32>, i32 -> vector<4x256xf32>
    %c0_111 = arith.constant 0 : index
    %c0_112 = arith.constant 0 : index
    %139 = vector.load %arg7[%c0_111, %c0_112] : memref<72x256xf32, #tpu.memory_space<vmem>>, vector<4x256xf32>
    tpu.vector_store %arg7[%c0_111, %c0_112], %138 {strides = array<i32>} : memref<72x256xf32, #tpu.memory_space<vmem>>, vector<4x256xf32>,
    %c16_i32_113 = arith.constant 16 : i32
    %140 = tpu.dynamic_rotate %127 by %c16_i32_113 dim 1 : vector<4x256xf32>, i32 -> vector<4x256xf32>
    %c8_114 = arith.constant 8 : index
    %c0_115 = arith.constant 0 : index
    %141 = vector.load %arg7[%c8_114, %c0_115] : memref<72x256xf32, #tpu.memory_space<vmem>>, vector<4x256xf32>
    tpu.vector_store %arg7[%c8_114, %c0_115], %140 {strides = array<i32>} : memref<72x256xf32, #tpu.memory_space<vmem>>, vector<4x256xf32>,
    %c16_i32_116 = arith.constant 16 : i32
    %142 = tpu.dynamic_rotate %137 by %c16_i32_116 dim 1 : vector<4x256xf32>, i32 -> vector<4x256xf32>
    %c16_117 = arith.constant 16 : index
    %c0_118 = arith.constant 0 : index
    %143 = vector.load %arg7[%c16_117, %c0_118] : memref<72x256xf32, #tpu.memory_space<vmem>>, vector<4x256xf32>
    tpu.vector_store %arg7[%c16_117, %c0_118], %142 {strides = array<i32>} : memref<72x256xf32, #tpu.memory_space<vmem>>, vector<4x256xf32>,
    %c24_119 = arith.constant 24 : index
    %c0_120 = arith.constant 0 : index
    %144 = vector.load %arg7[%c24_119, %c0_120] : memref<72x256xf32, #tpu.memory_space<vmem>>, vector<4x256xf32>
    tpu.vector_store %arg7[%c24_119, %c0_120], %132 {strides = array<i32>} : memref<72x256xf32, #tpu.memory_space<vmem>>, vector<4x256xf32>,
    %c32_121 = arith.constant 32 : index
    %c0_122 = arith.constant 0 : index
    %145 = vector.load %arg7[%c32_121, %c0_122] : memref<72x256xf32, #tpu.memory_space<vmem>>, vector<4x256xf32>
    tpu.vector_store %arg7[%c32_121, %c0_122], %127 {strides = array<i32>} : memref<72x256xf32, #tpu.memory_space<vmem>>, vector<4x256xf32>,
    %c40_123 = arith.constant 40 : index
    %c0_124 = arith.constant 0 : index
    %146 = vector.load %arg7[%c40_123, %c0_124] : memref<72x256xf32, #tpu.memory_space<vmem>>, vector<4x256xf32>
    tpu.vector_store %arg7[%c40_123, %c0_124], %137 {strides = array<i32>} : memref<72x256xf32, #tpu.memory_space<vmem>>, vector<4x256xf32>,
    %c240_i32_125 = arith.constant 240 : i32
    %147 = tpu.dynamic_rotate %132 by %c240_i32_125 dim 1 : vector<4x256xf32>, i32 -> vector<4x256xf32>
    %c48_126 = arith.constant 48 : index
    %c0_127 = arith.constant 0 : index
    %148 = vector.load %arg7[%c48_126, %c0_127] : memref<72x256xf32, #tpu.memory_space<vmem>>, vector<4x256xf32>
    tpu.vector_store %arg7[%c48_126, %c0_127], %147 {strides = array<i32>} : memref<72x256xf32, #tpu.memory_space<vmem>>, vector<4x256xf32>,
    %c240_i32_128 = arith.constant 240 : i32
    %149 = tpu.dynamic_rotate %127 by %c240_i32_128 dim 1 : vector<4x256xf32>, i32 -> vector<4x256xf32>
    %c56_129 = arith.constant 56 : index
    %c0_130 = arith.constant 0 : index
    %150 = vector.load %arg7[%c56_129, %c0_130] : memref<72x256xf32, #tpu.memory_space<vmem>>, vector<4x256xf32>
    tpu.vector_store %arg7[%c56_129, %c0_130], %149 {strides = array<i32>} : memref<72x256xf32, #tpu.memory_space<vmem>>, vector<4x256xf32>,
    %c240_i32_131 = arith.constant 240 : i32
    %151 = tpu.dynamic_rotate %137 by %c240_i32_131 dim 1 : vector<4x256xf32>, i32 -> vector<4x256xf32>
    %c64_132 = arith.constant 64 : index
    %c0_133 = arith.constant 0 : index
    %152 = vector.load %arg7[%c64_132, %c0_133] : memref<72x256xf32, #tpu.memory_space<vmem>>, vector<4x256xf32>
    tpu.vector_store %arg7[%c64_132, %c0_133], %151 {strides = array<i32>} : memref<72x256xf32, #tpu.memory_space<vmem>>, vector<4x256xf32>,
    %c0_134 = arith.constant 0 : index
    %c0_135 = arith.constant 0 : index
    %153 = vector.load %arg7[%c0_134, %c0_135] : memref<72x256xf32, #tpu.memory_space<vmem>>, vector<72x256xf32>
    %cst_136 = arith.constant dense<0.000000e+00> : vector<4x256xf32>
    %154 = tpu.matmul %22, %153, %cst_136 {dimension_numbers = #tpu.dot_dimension_numbers<[1], [0], [0], [1], [0, 0, 1, 1], [], []>} : vector<4x72xf32>, vector<72x256xf32>, vector<4x256xf32> -> vector<4x256xf32>
    %155 = vector.broadcast %24 : vector<4x1xf32> to vector<4x256xf32>
    %156 = arith.addf %154, %155 : vector<4x256xf32>
    %cst_137 = arith.constant 0.000000e+00 : f32
    %157 = vector.broadcast %cst_137 : f32 to vector<4x256xf32>
    %158 = arith.maximumf %156, %157 : vector<4x256xf32>
    %159 = arith.addf %158, %96 : vector<4x256xf32>
    %c1_138 = arith.constant 1 : index
    %c0_139 = arith.constant 0 : index
    %c0_140 = arith.constant 0 : index
    %160 = vector.load %arg6[%c1_138, %c0_139, %c0_140] : memref<2x4x256xf32, #tpu.memory_space<vmem>>, vector<1x4x256xf32>
    %161 = vector.shape_cast %160 : vector<1x4x256xf32> to vector<4x256xf32>
    %162 = vector.shape_cast %159 : vector<4x256xf32> to vector<1x4x256xf32>
    tpu.vector_store %arg6[%c1_138, %c0_139, %c0_140], %162 {strides = array<i32>} : memref<2x4x256xf32, #tpu.memory_space<vmem>>, vector<1x4x256xf32>,
    return
  }
  func.func @transform_0(%arg0: i32) -> (i32, i32, i32) {
    %c0_i32 = arith.constant 0 : i32
    %c0_i32_0 = arith.constant 0 : i32
    %c0_i32_1 = arith.constant 0 : i32
    return %arg0, %c0_i32, %c0_i32_0 : i32, i32, i32
  }
  func.func @transform_1(%arg0: i32) -> (i32, i32) {
    %c0_i32 = arith.constant 0 : i32
    %c0_i32_0 = arith.constant 0 : i32
    %c0_i32_1 = arith.constant 0 : i32
    return %c0_i32, %c0_i32_0 : i32, i32
  }
  func.func @transform_2(%arg0: i32) -> (i32, i32) {
    %c0_i32 = arith.constant 0 : i32
    %c0_i32_0 = arith.constant 0 : i32
    %c0_i32_1 = arith.constant 0 : i32
    return %c0_i32, %c0_i32_0 : i32, i32
  }
  func.func @transform_3(%arg0: i32) -> (i32, i32) {
    %c0_i32 = arith.constant 0 : i32
    %c0_i32_0 = arith.constant 0 : i32
    %c0_i32_1 = arith.constant 0 : i32
    return %c0_i32, %c0_i32_0 : i32, i32
  }
  func.func @transform_4(%arg0: i32) -> (i32, i32) {
    %c0_i32 = arith.constant 0 : i32
    %c0_i32_0 = arith.constant 0 : i32
    %c0_i32_1 = arith.constant 0 : i32
    return %c0_i32, %c0_i32_0 : i32, i32
  }
  func.func @transform_5(%arg0: i32) -> (i32, i32, i32) {
    %c0_i32 = arith.constant 0 : i32
    %c0_i32_0 = arith.constant 0 : i32
    %c0_i32_1 = arith.constant 0 : i32
    return %arg0, %c0_i32, %c0_i32_0 : i32, i32, i32
  }
}

</mosaic_0001>

<llo_original>
// kernel: tpu_custom_call.1
$region0: #{tpu_custom_call.1}
  #allocation0 [shape = 'u32[]', space=smem, size = 0x4, offset = 0x4, fixed_abs, tag = 'smem constant byte address 0x4 - core index']
  #allocation1 [shape = 'u32[72,128]{1,0:T(1,128)}', space=vmem, size = 0x9000, scoped, tag = 'internal scratch']
  #allocation2 [shape = 'f32[72,256]{1,0:T(8,128)}', space=vmem, size = 0x12000, scoped, tag = 'scratch operand']
  %s0 = inlined_call_operand.hbm [shape: f32[2,4,256], index: 0, kind: input, shape index: {}]
  %s1 = inlined_call_operand.vmem [shape: f32[4,72], index: 1, kind: input, shape index: {}]
  %s2 = inlined_call_operand.vmem [shape: f32[4,1], index: 2, kind: input, shape index: {}]
  %s3 = inlined_call_operand.vmem [shape: f32[4,72], index: 3, kind: input, shape index: {}]
  %s4 = inlined_call_operand.vmem [shape: f32[4,1], index: 4, kind: input, shape index: {}]
  %s5 = inlined_call_operand.hbm [shape: f32[2,4,256], index: 5, kind: output, shape index: {}]
  %s6 = sld [smem:[#allocation0]]
  $region34: #{tpu_custom_call.1} parent=0
    _
  %s8 = ssub.s32 1, %s6
  %s9 = scalar_select 0, %s8, %s6
  $region1: #{tpu_custom_call.1} parent=0
    #allocation3 [shape = 'u8[8192]{0}', space=vmem, size = 0x2000, scoped, tag = 'input window, operand 0, single buffered']
    #allocation4 [shape = 's32[1]{0}', space=sflag, size = 0x4, scoped, tag = 'scoped memory for tpu_custom_call.1']
    #allocation5 [shape = 's32[1]{0}', space=sflag, size = 0x4, scoped, tag = 'scoped memory for tpu_custom_call.1']
    #allocation6 [shape = 'u8[8192]{0}', space=vmem, size = 0x2000, scoped, tag = 'output window, operand 0, single buffered']
    %10 = vsyncpa [#allocation4], 0
    %11 = vsyncpa [#allocation5], 0
    // Predicated region
    $region2: #{tpu_custom_call.1} parent=1 // pred_check
      _
    $region3: #{tpu_custom_call.1} parent=1 // pred_check_branch
      %13 = sbr.rel (0) target = $region5
    $region4: #{tpu_custom_call.1} parent=1 // pred_region
      %15 = vsyncadd [#allocation4], 0
      %s16 = sshll.u32 %s0, 4
      %s17 = int_to_ptr.hbm [resolvable:$true] %s16
      %s18 = sshll.u32 [#allocation3], 4
      %s19 = int_to_ptr.vmem [resolvable:$true] %s18
      %24 = dma.hbm_to_vmem [thread:$0]  %s17, 256, %s19, [#allocation4], 128, 128, 8
    $region5: #{tpu_custom_call.1} parent=1 // pred_fallthru
      _
    // Predicated region
    $region6: #{tpu_custom_call.1} parent=1 // pred_check
      _
    $region7: #{tpu_custom_call.1} parent=1 // pred_check_branch
      %26 = sbr.rel (0) target = $region9
    $region8: #{tpu_custom_call.1} parent=1 // pred_region
      _
    $region9: #{tpu_custom_call.1} parent=1 // pred_fallthru
      _
    // Predicated region
    $region10: #{tpu_custom_call.1} parent=1 // pred_check
      _
    $region11: #{tpu_custom_call.1} parent=1 // pred_check_branch
      %28 = sbr.rel (0) target = $region13
    $region12: #{tpu_custom_call.1} parent=1 // pred_region
      _
    $region13: #{tpu_custom_call.1} parent=1 // pred_fallthru
      _
    // Predicated region
    $region14: #{tpu_custom_call.1} parent=1 // pred_check
      _
    $region15: #{tpu_custom_call.1} parent=1 // pred_check_branch
      %30 = sbr.rel (0) target = $region17
    $region16: #{tpu_custom_call.1} parent=1 // pred_region
      _
    $region17: #{tpu_custom_call.1} parent=1 // pred_fallthru
      _
    // Predicated region
    $region18: #{tpu_custom_call.1} parent=1 // pred_check
      _
    $region19: #{tpu_custom_call.1} parent=1 // pred_check_branch
      %32 = sbr.rel (0) target = $region21
    $region20: #{tpu_custom_call.1} parent=1 // pred_region
      _
    $region21: #{tpu_custom_call.1} parent=1 // pred_fallthru
      _
    // Predicated region
    $region22: #{tpu_custom_call.1} parent=1 // pred_check
      _
    $region23: #{tpu_custom_call.1} parent=1 // pred_check_branch
      %34 = sbr.rel (0) target = $region25
    $region24: #{tpu_custom_call.1} parent=1 // pred_region
      %36 = dma.done [#allocation4], 256
    $region25: #{tpu_custom_call.1} parent=1 // pred_fallthru
      _
    %v37 = vlaneseq
    %v38 = vand.u32 %v37, 127
    %v39 = vadd.s32 %v38, 128
    %vm40 = vcmp.lt.s32.totalorder %v38, 0
    %v41 = vsub.s32 0, %v38
    %v42 = vsel %vm40, %v41, %v38
    %v43 = vshrl.u32 %v42, 4
    %v44 = vand.u32 %v42, 15
    %v45 = vsub.s32 0, %v44
    %v46 = vsel %vm40, %v45, %v44
    %vm47 = vcmp.lt.s32.totalorder %v39, 0
    %v48 = vsub.s32 0, %v39
    %v49 = vsel %vm47, %v48, %v39
    %v50 = vshrl.u32 %v49, 4
    %v51 = vand.u32 %v49, 15
    %v52 = vsub.s32 0, %v51
    %v53 = vsel %vm47, %v52, %v51
    %vm54 = vcmp.ne.s32.totalorder %v46, 0
    %vm55 = vcmp.ne.s32.totalorder %v53, 0
    %vm56 = vcmp.lt.s32.totalorder %v46, 0
    %vm57 = vcmp.lt.s32.totalorder %v53, 0
    %vm58 = vmand %vm56, %vm54
    %vm59 = vmand %vm57, %vm55
    %v60 = vadd.s32 %v46, 16
    %v61 = vadd.s32 %v53, 16
    %v62 = vsel %vm58, %v60, %v46
    %v63 = vsel %vm59, %v61, %v53
    %vm64 = vcmp.eq.s32.totalorder %v62, 0
    %vm65 = vcmp.eq.s32.totalorder %v63, 0
    %vm66 = vcmp.eq.s32.totalorder %v62, 15
    %vm67 = vcmp.eq.s32.totalorder %v63, 15
    %v68 = vld [vmem:[%s1] sm:$0xf]
    %v69 = vld [vmem:[%s3] sm:$0xf]
    %v70 = vld [vmem:[%s2] sm:$0xf]
    %v71 = vld [vmem:[%s4] sm:$0xf]
    %72 = vst [vmem:[#allocation2] sm:$0xff] 0.0
    %73 = vst [vmem:[#allocation2 + $0x8] sm:$0xff] 0.0
    %74 = vst [vmem:[#allocation2 + $0x10] sm:$0xff] 0.0
    %75 = vst [vmem:[#allocation2 + $0x18] sm:$0xff] 0.0
    %76 = vst [vmem:[#allocation2 + $0x20] sm:$0xff] 0.0
    %77 = vst [vmem:[#allocation2 + $0x28] sm:$0xff] 0.0
    %78 = vst [vmem:[#allocation2 + $0x30] sm:$0xff] 0.0
    %79 = vst [vmem:[#allocation2 + $0x38] sm:$0xff] 0.0
    %80 = vst [vmem:[#allocation2 + $0x40] sm:$0xff] 0.0
    %81 = vst [vmem:[#allocation2 + $0x48] sm:$0xff] 0.0
    %82 = vst [vmem:[#allocation2 + $0x50] sm:$0xff] 0.0
    %83 = vst [vmem:[#allocation2 + $0x58] sm:$0xff] 0.0
    %84 = vst [vmem:[#allocation2 + $0x60] sm:$0xff] 0.0
    %85 = vst [vmem:[#allocation2 + $0x68] sm:$0xff] 0.0
    %86 = vst [vmem:[#allocation2 + $0x70] sm:$0xff] 0.0
    %87 = vst [vmem:[#allocation2 + $0x78] sm:$0xff] 0.0
    %88 = vst [vmem:[#allocation2 + $0x80] sm:$0xff] 0.0
    %89 = vst [vmem:[#allocation2 + $0x88] sm:$0xff] 0.0
    %v90 = vld [vmem:[#allocation3] sm:$0xff]
    %92 = vst [vmem:[#allocation1] ss:$2 sm:$0xff] %v90
    %v93 = vld.sshfl [vmem:[#allocation1] sm:$0xff pattern:$0x75316420]
    %v94 = vld.sshfl [vmem:[#allocation1 + $0x8] sm:$0xff pattern:$0x75316420]
    %97 = vrot.lane.b32.xlu0 %v93, 113
    %v98 = vpop.permute.xlu0 %97
    %99 = vrot.lane.b32.xlu0 %v94, 113
    %v100 = vpop.permute.xlu0 %99
    %vm101 = vcmp.lt.s32.totalorder %v38, 113
    %v102 = vsel %vm101, %v98, %v100
    %v103 = vsel %vm101, %v100, %v98
    %104 = vst [vmem:[#allocation1] ss:$2 sm:$0xff] %v90
    %v105 = vld.sshfl [vmem:[#allocation1] sm:$0xff pattern:$0x75316420]
    %v106 = vld.sshfl [vmem:[#allocation1 + $0x8] sm:$0xff pattern:$0x75316420]
    %109 = vrot.lane.b32.xlu0 %v105, 1
    %v110 = vpop.permute.xlu0 %109
    %111 = vrot.lane.b32.xlu0 %v106, 1
    %v112 = vpop.permute.xlu0 %111
    %vm113 = vcmp.lt.s32.totalorder %v38, 1
    %v114 = vsel %vm113, %v110, %v112
    %v115 = vsel %vm113, %v112, %v110
    %v116 = vsel %vm64, 1, 0
    %v117 = vsel %vm65, 1, 0
    %vm118 = vcmp.eq.s32.totalorder %v116, 1
    %vm119 = vcmp.eq.s32.totalorder %v117, 1
    %v120 = vsel %vm118, %v102, %v115
    %v121 = vsel %vm119, %v103, %v114
    %122 = vst [vmem:[#allocation1] ss:$2 sm:$0xff] %v90
    %v123 = vld.sshfl [vmem:[#allocation1] sm:$0xff pattern:$0x75316420]
    %v124 = vld.sshfl [vmem:[#allocation1 + $0x8] sm:$0xff pattern:$0x75316420]
    %127 = vrot.lane.b32.xlu0 %v123, 15
    %v128 = vpop.permute.xlu0 %127
    %129 = vrot.lane.b32.xlu0 %v124, 15
    %v130 = vpop.permute.xlu0 %129
    %vm131 = vcmp.lt.s32.totalorder %v38, 15
    %v132 = vsel %vm131, %v128, %v130
    %v133 = vsel %vm131, %v130, %v128
    %134 = vst [vmem:[#allocation1] ss:$2 sm:$0xff] %v90
    %v135 = vld.sshfl [vmem:[#allocation1] sm:$0xff pattern:$0x75316420]
    %v136 = vld.sshfl [vmem:[#allocation1 + $0x8] sm:$0xff pattern:$0x75316420]
    %139 = vrot.lane.b32.xlu0 %v135, 127
    %v140 = vpop.permute.xlu0 %139
    %141 = vrot.lane.b32.xlu0 %v136, 127
    %v142 = vpop.permute.xlu0 %141
    %vm143 = vcmp.lt.s32.totalorder %v38, 127
    %v144 = vsel %vm143, %v140, %v142
    %v145 = vsel %vm143, %v142, %v140
    %v146 = vsel %vm66, 1, 0
    %v147 = vsel %vm67, 1, 0
    %vm148 = vcmp.eq.s32.totalorder %v146, 1
    %vm149 = vcmp.eq.s32.totalorder %v147, 1
    %v150 = vsel %vm148, %v133, %v144
    %v151 = vsel %vm149, %v132, %v145
    %152 = vrot.lane.b32.xlu0 %v120, 16
    %v153 = vpop.permute.xlu0 %152
    %154 = vrot.lane.b32.xlu0 %v121, 16
    %v155 = vpop.permute.xlu0 %154
    %vm156 = vcmp.lt.s32.totalorder %v38, 16
    %v157 = vsel %vm156, %v153, %v155
    %v158 = vsel %vm156, %v155, %v153
    %159 = vst [vmem:[#allocation2] sm:$0xf] %v158
    %160 = vst [vmem:[#allocation2 + $0x8] sm:$0xf] %v157
    %161 = vst [vmem:[#allocation1] ss:$2 sm:$0xff] %v90
    %v162 = vld.sshfl [vmem:[#allocation1] sm:$0xff pattern:$0x75316420]
    %v163 = vld.sshfl [vmem:[#allocation1 + $0x8] sm:$0xff pattern:$0x75316420]
    %166 = vrot.lane.b32.xlu0 %v162, 16
    %v167 = vpop.permute.xlu0 %166
    %168 = vrot.lane.b32.xlu0 %v163, 16
    %v169 = vpop.permute.xlu0 %168
    %v170 = vsel %vm156, %v167, %v169
    %v171 = vsel %vm156, %v169, %v167
    %172 = vst [vmem:[#allocation2 + $0x10] sm:$0xf] %v171
    %173 = vst [vmem:[#allocation2 + $0x18] sm:$0xf] %v170
    %174 = vrot.lane.b32.xlu0 %v150, 16
    %v175 = vpop.permute.xlu0 %174
    %176 = vrot.lane.b32.xlu0 %v151, 16
    %v177 = vpop.permute.xlu0 %176
    %v178 = vsel %vm156, %v175, %v177
    %v179 = vsel %vm156, %v177, %v175
    %180 = vst [vmem:[#allocation2 + $0x20] sm:$0xf] %v179
    %181 = vst [vmem:[#allocation2 + $0x28] sm:$0xf] %v178
    %182 = vst [vmem:[#allocation2 + $0x30] sm:$0xf] %v120
    %183 = vst [vmem:[#allocation2 + $0x38] sm:$0xf] %v121
    %184 = vst [vmem:[#allocation1] ss:$2 sm:$0xff] %v90
    %v185 = vld.sshfl [vmem:[#allocation1] sm:$0xff pattern:$0x75316420]
    %v186 = vld.sshfl [vmem:[#allocation1 + $0x8] sm:$0xff pattern:$0x75316420]
    %189 = vst [vmem:[#allocation2 + $0x40] sm:$0xf] %v185
    %190 = vst [vmem:[#allocation2 + $0x48] sm:$0xf] %v186
    %191 = vst [vmem:[#allocation2 + $0x50] sm:$0xf] %v150
    %192 = vst [vmem:[#allocation2 + $0x58] sm:$0xf] %v151
    %193 = vrot.lane.b32.xlu0 %v120, 112
    %v194 = vpop.permute.xlu0 %193
    %195 = vrot.lane.b32.xlu0 %v121, 112
    %v196 = vpop.permute.xlu0 %195
    %vm197 = vcmp.lt.s32.totalorder %v38, 112
    %v198 = vsel %vm197, %v194, %v196
    %v199 = vsel %vm197, %v196, %v194
    %200 = vst [vmem:[#allocation2 + $0x60] sm:$0xf] %v198
    %201 = vst [vmem:[#allocation2 + $0x68] sm:$0xf] %v199
    %202 = vst [vmem:[#allocation1] ss:$2 sm:$0xff] %v90
    %v203 = vld.sshfl [vmem:[#allocation1] sm:$0xff pattern:$0x75316420]
    %v204 = vld.sshfl [vmem:[#allocation1 + $0x8] sm:$0xff pattern:$0x75316420]
    %207 = vrot.lane.b32.xlu0 %v203, 112
    %v208 = vpop.permute.xlu0 %207
    %209 = vrot.lane.b32.xlu0 %v204, 112
    %v210 = vpop.permute.xlu0 %209
    %v211 = vsel %vm197, %v208, %v210
    %v212 = vsel %vm197, %v210, %v208
    %213 = vst [vmem:[#allocation2 + $0x70] sm:$0xf] %v211
    %214 = vst [vmem:[#allocation2 + $0x78] sm:$0xf] %v212
    %215 = vrot.lane.b32.xlu0 %v150, 112
    %v216 = vpop.permute.xlu0 %215
    %217 = vrot.lane.b32.xlu0 %v151, 112
    %v218 = vpop.permute.xlu0 %217
    %v219 = vsel %vm197, %v216, %v218
    %v220 = vsel %vm197, %v218, %v216
    %221 = vst [vmem:[#allocation2 + $0x80] sm:$0xf] %v219
    %222 = vst [vmem:[#allocation2 + $0x88] sm:$0xf] %v220
    %v223 = vld [vmem:[#allocation2] sm:$0xff]
    %v224 = vld [vmem:[#allocation2 + $0x8] sm:$0xff]
    %v225 = vld [vmem:[#allocation2 + $0x10] sm:$0xff]
    %v226 = vld [vmem:[#allocation2 + $0x18] sm:$0xff]
    %v227 = vld [vmem:[#allocation2 + $0x20] sm:$0xff]
    %v228 = vld [vmem:[#allocation2 + $0x28] sm:$0xff]
    %v229 = vld [vmem:[#allocation2 + $0x30] sm:$0xff]
    %v230 = vld [vmem:[#allocation2 + $0x38] sm:$0xff]
    %v231 = vld [vmem:[#allocation2 + $0x40] sm:$0xff]
    %v232 = vld [vmem:[#allocation2 + $0x48] sm:$0xff]
    %v233 = vld [vmem:[#allocation2 + $0x50] sm:$0xff]
    %v234 = vld [vmem:[#allocation2 + $0x58] sm:$0xff]
    %v235 = vld [vmem:[#allocation2 + $0x60] sm:$0xff]
    %v236 = vld [vmem:[#allocation2 + $0x68] sm:$0xff]
    %v237 = vld [vmem:[#allocation2 + $0x70] sm:$0xff]
    %v238 = vld [vmem:[#allocation2 + $0x78] sm:$0xff]
    %v239 = vld [vmem:[#allocation2 + $0x80] sm:$0xff]
    %v240 = vld [vmem:[#allocation2 + $0x88] sm:$0xff]
    %242 = vset.pattern.permute.xlu0 0
    %243 = vperm.xlu0 %242, %v70
    %v244 = vpop.permute.xlu0 %243
    %vm246 = vcmask 588800
    %v248 = vsel %vm246, %v68, 0
    %250 = vmatpush.msra.mxu0 0.0
    %251 = vmatpush.msra.mxu0 0.0
    %252 = vmatpush.msra.mxu0 0.0
    %253 = vmatpush.msra.mxu0 0.0
    %254 = vmatpush.msra.mxu0 0.0
    %255 = vmatpush.msra.mxu0 0.0
    %256 = vmatpush.msra.mxu0 0.0
    %257 = vmatpush.msra.mxu0 %v239
    %258 = vmatpush.msra.mxu0 %v237
    %259 = vmatpush.msra.mxu0 %v235
    %260 = vmatpush.msra.mxu0 %v233
    %261 = vmatpush.msra.mxu0 %v231
    %262 = vmatpush.msra.mxu0 %v229
    %263 = vmatpush.msra.mxu0 %v227
    %264 = vmatpush.msra.mxu0 %v225
    %265 = vmatpush.msra.mxu0 %v223
    %266 = vmatmul.f32.gmra.mxu0 %v248
    %v267 = vpop.f32.mrf.mxu0
    %v268 = vadd.f32 %v244, %v267
    %269 = vdwg.mxu0
    %270 = vmatpush.msra.mxu0 0.0
    %271 = vmatpush.msra.mxu0 0.0
    %272 = vmatpush.msra.mxu0 0.0
    %273 = vmatpush.msra.mxu0 0.0
    %274 = vmatpush.msra.mxu0 0.0
    %275 = vmatpush.msra.mxu0 0.0
    %276 = vmatpush.msra.mxu0 0.0
    %277 = vmatpush.msra.mxu0 %v240
    %278 = vmatpush.msra.mxu0 %v238
    %279 = vmatpush.msra.mxu0 %v236
    %280 = vmatpush.msra.mxu0 %v234
    %281 = vmatpush.msra.mxu0 %v232
    %282 = vmatpush.msra.mxu0 %v230
    %283 = vmatpush.msra.mxu0 %v228
    %284 = vmatpush.msra.mxu0 %v226
    %285 = vmatpush.msra.mxu0 %v224
    %286 = vmatmul.f32.gmra.mxu0 %v248
    %v287 = vpop.f32.mrf.mxu0
    %v288 = vadd.f32 %v244, %v287
    %289 = vdwg.mxu0
    %v290 = vmax.f32 %v268, 0.0
    %v291 = vmax.f32 %v288, 0.0
    %292 = vrot.lane.b32.xlu0 %v290, 113
    %v293 = vpop.permute.xlu0 %292
    %294 = vrot.lane.b32.xlu0 %v291, 113
    %v295 = vpop.permute.xlu0 %294
    %v296 = vsel %vm101, %v293, %v295
    %v297 = vsel %vm101, %v295, %v293
    %298 = vrot.lane.b32.xlu0 %v290, 1
    %v299 = vpop.permute.xlu0 %298
    %300 = vrot.lane.b32.xlu0 %v291, 1
    %v301 = vpop.permute.xlu0 %300
    %v302 = vsel %vm113, %v299, %v301
    %v303 = vsel %vm113, %v301, %v299
    %v304 = vsel %vm118, %v296, %v303
    %v305 = vsel %vm119, %v297, %v302
    %306 = vrot.lane.b32.xlu0 %v290, 15
    %v307 = vpop.permute.xlu0 %306
    %308 = vrot.lane.b32.xlu0 %v291, 15
    %v309 = vpop.permute.xlu0 %308
    %v310 = vsel %vm131, %v307, %v309
    %v311 = vsel %vm131, %v309, %v307
    %312 = vrot.lane.b32.xlu0 %v290, 127
    %v313 = vpop.permute.xlu0 %312
    %314 = vrot.lane.b32.xlu0 %v291, 127
    %v315 = vpop.permute.xlu0 %314
    %v316 = vsel %vm143, %v313, %v315
    %v317 = vsel %vm143, %v315, %v313
    %v318 = vsel %vm148, %v311, %v316
    %v319 = vsel %vm149, %v310, %v317
    %320 = vrot.lane.b32.xlu0 %v304, 16
    %v321 = vpop.permute.xlu0 %320
    %322 = vrot.lane.b32.xlu0 %v305, 16
    %v323 = vpop.permute.xlu0 %322
    %v324 = vsel %vm156, %v321, %v323
    %v325 = vsel %vm156, %v323, %v321
    %326 = vst [vmem:[#allocation2] sm:$0xf] %v325
    %327 = vst [vmem:[#allocation2 + $0x8] sm:$0xf] %v324
    %328 = vrot.lane.b32.xlu0 %v290, 16
    %v329 = vpop.permute.xlu0 %328
    %330 = vrot.lane.b32.xlu0 %v291, 16
    %v331 = vpop.permute.xlu0 %330
    %v332 = vsel %vm156, %v329, %v331
    %v333 = vsel %vm156, %v331, %v329
    %334 = vst [vmem:[#allocation2 + $0x10] sm:$0xf] %v333
    %335 = vst [vmem:[#allocation2 + $0x18] sm:$0xf] %v332
    %336 = vrot.lane.b32.xlu0 %v318, 16
    %v337 = vpop.permute.xlu0 %336
    %338 = vrot.lane.b32.xlu0 %v319, 16
    %v339 = vpop.permute.xlu0 %338
    %v340 = vsel %vm156, %v337, %v339
    %v341 = vsel %vm156, %v339, %v337
    %342 = vst [vmem:[#allocation2 + $0x20] sm:$0xf] %v341
    %343 = vst [vmem:[#allocation2 + $0x28] sm:$0xf] %v340
    %344 = vst [vmem:[#allocation2 + $0x30] sm:$0xf] %v304
    %345 = vst [vmem:[#allocation2 + $0x38] sm:$0xf] %v305
    %346 = vst [vmem:[#allocation2 + $0x40] sm:$0xf] %v290
    %347 = vst [vmem:[#allocation2 + $0x48] sm:$0xf] %v291
    %348 = vst [vmem:[#allocation2 + $0x50] sm:$0xf] %v318
    %349 = vst [vmem:[#allocation2 + $0x58] sm:$0xf] %v319
    %350 = vrot.lane.b32.xlu0 %v304, 112
    %v351 = vpop.permute.xlu0 %350
    %352 = vrot.lane.b32.xlu0 %v305, 112
    %v353 = vpop.permute.xlu0 %352
    %v354 = vsel %vm197, %v351, %v353
    %v355 = vsel %vm197, %v353, %v351
    %356 = vst [vmem:[#allocation2 + $0x60] sm:$0xf] %v354
    %357 = vst [vmem:[#allocation2 + $0x68] sm:$0xf] %v355
    %358 = vrot.lane.b32.xlu0 %v290, 112
    %v359 = vpop.permute.xlu0 %358
    %360 = vrot.lane.b32.xlu0 %v291, 112
    %v361 = vpop.permute.xlu0 %360
    %v362 = vsel %vm197, %v359, %v361
    %v363 = vsel %vm197, %v361, %v359
    %364 = vst [vmem:[#allocation2 + $0x70] sm:$0xf] %v362
    %365 = vst [vmem:[#allocation2 + $0x78] sm:$0xf] %v363
    %366 = vrot.lane.b32.xlu0 %v318, 112
    %v367 = vpop.permute.xlu0 %366
    %368 = vrot.lane.b32.xlu0 %v319, 112
    %v369 = vpop.permute.xlu0 %368
    %v370 = vsel %vm197, %v367, %v369
    %v371 = vsel %vm197, %v369, %v367
    %372 = vst [vmem:[#allocation2 + $0x80] sm:$0xf] %v370
    %373 = vst [vmem:[#allocation2 + $0x88] sm:$0xf] %v371
    %v374 = vld [vmem:[#allocation2] sm:$0xff]
    %v375 = vld [vmem:[#allocation2 + $0x8] sm:$0xff]
    %v376 = vld [vmem:[#allocation2 + $0x10] sm:$0xff]
    %v377 = vld [vmem:[#allocation2 + $0x18] sm:$0xff]
    %v378 = vld [vmem:[#allocation2 + $0x20] sm:$0xff]
    %v379 = vld [vmem:[#allocation2 + $0x28] sm:$0xff]
    %v380 = vld [vmem:[#allocation2 + $0x30] sm:$0xff]
    %v381 = vld [vmem:[#allocation2 + $0x38] sm:$0xff]
    %v382 = vld [vmem:[#allocation2 + $0x40] sm:$0xff]
    %v383 = vld [vmem:[#allocation2 + $0x48] sm:$0xff]
    %v384 = vld [vmem:[#allocation2 + $0x50] sm:$0xff]
    %v385 = vld [vmem:[#allocation2 + $0x58] sm:$0xff]
    %v386 = vld [vmem:[#allocation2 + $0x60] sm:$0xff]
    %v387 = vld [vmem:[#allocation2 + $0x68] sm:$0xff]
    %v388 = vld [vmem:[#allocation2 + $0x70] sm:$0xff]
    %v389 = vld [vmem:[#allocation2 + $0x78] sm:$0xff]
    %v390 = vld [vmem:[#allocation2 + $0x80] sm:$0xff]
    %v391 = vld [vmem:[#allocation2 + $0x88] sm:$0xff]
    %393 = vset.pattern.permute.xlu0 0
    %394 = vperm.xlu0 %393, %v71
    %v395 = vpop.permute.xlu0 %394
    %v398 = vsel %vm246, %v69, 0
    %400 = vmatpush.msra.mxu0 0.0
    %401 = vmatpush.msra.mxu0 0.0
    %402 = vmatpush.msra.mxu0 0.0
    %403 = vmatpush.msra.mxu0 0.0
    %404 = vmatpush.msra.mxu0 0.0
    %405 = vmatpush.msra.mxu0 0.0
    %406 = vmatpush.msra.mxu0 0.0
    %407 = vmatpush.msra.mxu0 %v390
    %408 = vmatpush.msra.mxu0 %v388
    %409 = vmatpush.msra.mxu0 %v386
    %410 = vmatpush.msra.mxu0 %v384
    %411 = vmatpush.msra.mxu0 %v382
    %412 = vmatpush.msra.mxu0 %v380
    %413 = vmatpush.msra.mxu0 %v378
    %414 = vmatpush.msra.mxu0 %v376
    %415 = vmatpush.msra.mxu0 %v374
    %416 = vmatmul.f32.gmra.mxu0 %v398
    %v417 = vpop.f32.mrf.mxu0
    %v418 = vadd.f32 %v395, %v417
    %419 = vdwg.mxu0
    %420 = vmatpush.msra.mxu0 0.0
    %421 = vmatpush.msra.mxu0 0.0
    %422 = vmatpush.msra.mxu0 0.0
    %423 = vmatpush.msra.mxu0 0.0
    %424 = vmatpush.msra.mxu0 0.0
    %425 = vmatpush.msra.mxu0 0.0
    %426 = vmatpush.msra.mxu0 0.0
    %427 = vmatpush.msra.mxu0 %v391
    %428 = vmatpush.msra.mxu0 %v389
    %429 = vmatpush.msra.mxu0 %v387
    %430 = vmatpush.msra.mxu0 %v385
    %431 = vmatpush.msra.mxu0 %v383
    %432 = vmatpush.msra.mxu0 %v381
    %433 = vmatpush.msra.mxu0 %v379
    %434 = vmatpush.msra.mxu0 %v377
    %435 = vmatpush.msra.mxu0 %v375
    %436 = vmatmul.f32.gmra.mxu0 %v398
    %v437 = vpop.f32.mrf.mxu0
    %v438 = vadd.f32 %v395, %v437
    %439 = vdwg.mxu0
    %v440 = vmax.f32 %v418, 0.0
    %v441 = vmax.f32 %v438, 0.0
    %442 = vst [vmem:[#allocation1] ss:$2 sm:$0xff] %v90
    %v443 = vld.sshfl [vmem:[#allocation1] sm:$0xff pattern:$0x75316420]
    %v444 = vld.sshfl [vmem:[#allocation1 + $0x8] sm:$0xff pattern:$0x75316420]
    %v447 = vadd.f32 %v440, %v443
    %v448 = vadd.f32 %v441, %v444
    %v451 = vrot.slane %v448, 4
    %vm452 = vcmask 1043456
    %v453 = vsel %vm452, %v447, %v451
    %455 = vst [vmem:[#allocation6] sm:$0xff] %v453
    %s456 = scalar_lea.vmem [#allocation3], 8
    %v457 = vld [vmem:[%s456] sm:$0xff]
    %459 = vst [vmem:[#allocation1] ss:$2 sm:$0xff] %v457
    %v460 = vld.sshfl [vmem:[#allocation1] sm:$0xff pattern:$0x75316420]
    %v461 = vld.sshfl [vmem:[#allocation1 + $0x8] sm:$0xff pattern:$0x75316420]
    %464 = vrot.lane.b32.xlu0 %v460, 113
    %v465 = vpop.permute.xlu0 %464
    %466 = vrot.lane.b32.xlu0 %v461, 113
    %v467 = vpop.permute.xlu0 %466
    %v468 = vsel %vm101, %v465, %v467
    %v469 = vsel %vm101, %v467, %v465
    %470 = vst [vmem:[#allocation1] ss:$2 sm:$0xff] %v457
    %v471 = vld.sshfl [vmem:[#allocation1] sm:$0xff pattern:$0x75316420]
    %v472 = vld.sshfl [vmem:[#allocation1 + $0x8] sm:$0xff pattern:$0x75316420]
    %475 = vrot.lane.b32.xlu0 %v471, 1
    %v476 = vpop.permute.xlu0 %475
    %477 = vrot.lane.b32.xlu0 %v472, 1
    %v478 = vpop.permute.xlu0 %477
    %v479 = vsel %vm113, %v476, %v478
    %v480 = vsel %vm113, %v478, %v476
    %v481 = vsel %vm118, %v468, %v480
    %v482 = vsel %vm119, %v469, %v479
    %483 = vst [vmem:[#allocation1] ss:$2 sm:$0xff] %v457
    %v484 = vld.sshfl [vmem:[#allocation1] sm:$0xff pattern:$0x75316420]
    %v485 = vld.sshfl [vmem:[#allocation1 + $0x8] sm:$0xff pattern:$0x75316420]
    %488 = vrot.lane.b32.xlu0 %v484, 15
    %v489 = vpop.permute.xlu0 %488
    %490 = vrot.lane.b32.xlu0 %v485, 15
    %v491 = vpop.permute.xlu0 %490
    %v492 = vsel %vm131, %v489, %v491
    %v493 = vsel %vm131, %v491, %v489
    %494 = vst [vmem:[#allocation1] ss:$2 sm:$0xff] %v457
    %v495 = vld.sshfl [vmem:[#allocation1] sm:$0xff pattern:$0x75316420]
    %v496 = vld.sshfl [vmem:[#allocation1 + $0x8] sm:$0xff pattern:$0x75316420]
    %499 = vrot.lane.b32.xlu0 %v495, 127
    %v500 = vpop.permute.xlu0 %499
    %501 = vrot.lane.b32.xlu0 %v496, 127
    %v502 = vpop.permute.xlu0 %501
    %v503 = vsel %vm143, %v500, %v502
    %v504 = vsel %vm143, %v502, %v500
    %v505 = vsel %vm148, %v493, %v503
    %v506 = vsel %vm149, %v492, %v504
    %507 = vrot.lane.b32.xlu0 %v481, 16
    %v508 = vpop.permute.xlu0 %507
    %509 = vrot.lane.b32.xlu0 %v482, 16
    %v510 = vpop.permute.xlu0 %509
    %v511 = vsel %vm156, %v508, %v510
    %v512 = vsel %vm156, %v510, %v508
    %513 = vst [vmem:[#allocation2] sm:$0xf] %v512
    %514 = vst [vmem:[#allocation2 + $0x8] sm:$0xf] %v511
    %515 = vst [vmem:[#allocation1] ss:$2 sm:$0xff] %v457
    %v516 = vld.sshfl [vmem:[#allocation1] sm:$0xff pattern:$0x75316420]
    %v517 = vld.sshfl [vmem:[#allocation1 + $0x8] sm:$0xff pattern:$0x75316420]
    %520 = vrot.lane.b32.xlu0 %v516, 16
    %v521 = vpop.permute.xlu0 %520
    %522 = vrot.lane.b32.xlu0 %v517, 16
    %v523 = vpop.permute.xlu0 %522
    %v524 = vsel %vm156, %v521, %v523
    %v525 = vsel %vm156, %v523, %v521
    %526 = vst [vmem:[#allocation2 + $0x10] sm:$0xf] %v525
    %527 = vst [vmem:[#allocation2 + $0x18] sm:$0xf] %v524
    %528 = vrot.lane.b32.xlu0 %v505, 16
    %v529 = vpop.permute.xlu0 %528
    %530 = vrot.lane.b32.xlu0 %v506, 16
    %v531 = vpop.permute.xlu0 %530
    %v532 = vsel %vm156, %v529, %v531
    %v533 = vsel %vm156, %v531, %v529
    %534 = vst [vmem:[#allocation2 + $0x20] sm:$0xf] %v533
    %535 = vst [vmem:[#allocation2 + $0x28] sm:$0xf] %v532
    %536 = vst [vmem:[#allocation2 + $0x30] sm:$0xf] %v481
    %537 = vst [vmem:[#allocation2 + $0x38] sm:$0xf] %v482
    %538 = vst [vmem:[#allocation1] ss:$2 sm:$0xff] %v457
    %v539 = vld.sshfl [vmem:[#allocation1] sm:$0xff pattern:$0x75316420]
    %v540 = vld.sshfl [vmem:[#allocation1 + $0x8] sm:$0xff pattern:$0x75316420]
    %543 = vst [vmem:[#allocation2 + $0x40] sm:$0xf] %v539
    %544 = vst [vmem:[#allocation2 + $0x48] sm:$0xf] %v540
    %545 = vst [vmem:[#allocation2 + $0x50] sm:$0xf] %v505
    %546 = vst [vmem:[#allocation2 + $0x58] sm:$0xf] %v506
    %547 = vrot.lane.b32.xlu0 %v481, 112
    %v548 = vpop.permute.xlu0 %547
    %549 = vrot.lane.b32.xlu0 %v482, 112
    %v550 = vpop.permute.xlu0 %549
    %v551 = vsel %vm197, %v548, %v550
    %v552 = vsel %vm197, %v550, %v548
    %553 = vst [vmem:[#allocation2 + $0x60] sm:$0xf] %v551
    %554 = vst [vmem:[#allocation2 + $0x68] sm:$0xf] %v552
    %555 = vst [vmem:[#allocation1] ss:$2 sm:$0xff] %v457
    %v556 = vld.sshfl [vmem:[#allocation1] sm:$0xff pattern:$0x75316420]
    %v557 = vld.sshfl [vmem:[#allocation1 + $0x8] sm:$0xff pattern:$0x75316420]
    %560 = vrot.lane.b32.xlu0 %v556, 112
    %v561 = vpop.permute.xlu0 %560
    %562 = vrot.lane.b32.xlu0 %v557, 112
    %v563 = vpop.permute.xlu0 %562
    %v564 = vsel %vm197, %v561, %v563
    %v565 = vsel %vm197, %v563, %v561
    %566 = vst [vmem:[#allocation2 + $0x70] sm:$0xf] %v564
    %567 = vst [vmem:[#allocation2 + $0x78] sm:$0xf] %v565
    %568 = vrot.lane.b32.xlu0 %v505, 112
    %v569 = vpop.permute.xlu0 %568
    %570 = vrot.lane.b32.xlu0 %v506, 112
    %v571 = vpop.permute.xlu0 %570
    %v572 = vsel %vm197, %v569, %v571
    %v573 = vsel %vm197, %v571, %v569
    %574 = vst [vmem:[#allocation2 + $0x80] sm:$0xf] %v572
    %575 = vst [vmem:[#allocation2 + $0x88] sm:$0xf] %v573
    %v576 = vld [vmem:[#allocation2] sm:$0xff]
    %v577 = vld [vmem:[#allocation2 + $0x8] sm:$0xff]
    %v578 = vld [vmem:[#allocation2 + $0x10] sm:$0xff]
    %v579 = vld [vmem:[#allocation2 + $0x18] sm:$0xff]
    %v580 = vld [vmem:[#allocation2 + $0x20] sm:$0xff]
    %v581 = vld [vmem:[#allocation2 + $0x28] sm:$0xff]
    %v582 = vld [vmem:[#allocation2 + $0x30] sm:$0xff]
    %v583 = vld [vmem:[#allocation2 + $0x38] sm:$0xff]
    %v584 = vld [vmem:[#allocation2 + $0x40] sm:$0xff]
    %v585 = vld [vmem:[#allocation2 + $0x48] sm:$0xff]
    %v586 = vld [vmem:[#allocation2 + $0x50] sm:$0xff]
    %v587 = vld [vmem:[#allocation2 + $0x58] sm:$0xff]
    %v588 = vld [vmem:[#allocation2 + $0x60] sm:$0xff]
    %v589 = vld [vmem:[#allocation2 + $0x68] sm:$0xff]
    %v590 = vld [vmem:[#allocation2 + $0x70] sm:$0xff]
    %v591 = vld [vmem:[#allocation2 + $0x78] sm:$0xff]
    %v592 = vld [vmem:[#allocation2 + $0x80] sm:$0xff]
    %v593 = vld [vmem:[#allocation2 + $0x88] sm:$0xff]
    %594 = vmatpush.msra.mxu0 0.0
    %595 = vmatpush.msra.mxu0 0.0
    %596 = vmatpush.msra.mxu0 0.0
    %597 = vmatpush.msra.mxu0 0.0
    %598 = vmatpush.msra.mxu0 0.0
    %599 = vmatpush.msra.mxu0 0.0
    %600 = vmatpush.msra.mxu0 0.0
    %601 = vmatpush.msra.mxu0 %v592
    %602 = vmatpush.msra.mxu0 %v590
    %603 = vmatpush.msra.mxu0 %v588
    %604 = vmatpush.msra.mxu0 %v586
    %605 = vmatpush.msra.mxu0 %v584
    %606 = vmatpush.msra.mxu0 %v582
    %607 = vmatpush.msra.mxu0 %v580
    %608 = vmatpush.msra.mxu0 %v578
    %609 = vmatpush.msra.mxu0 %v576
    %610 = vmatmul.f32.gmra.mxu0 %v248
    %v611 = vpop.f32.mrf.mxu0
    %v612 = vadd.f32 %v244, %v611
    %613 = vdwg.mxu0
    %614 = vmatpush.msra.mxu0 0.0
    %615 = vmatpush.msra.mxu0 0.0
    %616 = vmatpush.msra.mxu0 0.0
    %617 = vmatpush.msra.mxu0 0.0
    %618 = vmatpush.msra.mxu0 0.0
    %619 = vmatpush.msra.mxu0 0.0
    %620 = vmatpush.msra.mxu0 0.0
    %621 = vmatpush.msra.mxu0 %v593
    %622 = vmatpush.msra.mxu0 %v591
    %623 = vmatpush.msra.mxu0 %v589
    %624 = vmatpush.msra.mxu0 %v587
    %625 = vmatpush.msra.mxu0 %v585
    %626 = vmatpush.msra.mxu0 %v583
    %627 = vmatpush.msra.mxu0 %v581
    %628 = vmatpush.msra.mxu0 %v579
    %629 = vmatpush.msra.mxu0 %v577
    %630 = vmatmul.f32.gmra.mxu0 %v248
    %v631 = vpop.f32.mrf.mxu0
    %v632 = vadd.f32 %v244, %v631
    %633 = vdwg.mxu0
    %v634 = vmax.f32 %v612, 0.0
    %v635 = vmax.f32 %v632, 0.0
    %636 = vrot.lane.b32.xlu0 %v634, 113
    %v637 = vpop.permute.xlu0 %636
    %638 = vrot.lane.b32.xlu0 %v635, 113
    %v639 = vpop.permute.xlu0 %638
    %v640 = vsel %vm101, %v637, %v639
    %v641 = vsel %vm101, %v639, %v637
    %642 = vrot.lane.b32.xlu0 %v634, 1
    %v643 = vpop.permute.xlu0 %642
    %644 = vrot.lane.b32.xlu0 %v635, 1
    %v645 = vpop.permute.xlu0 %644
    %v646 = vsel %vm113, %v643, %v645
    %v647 = vsel %vm113, %v645, %v643
    %v648 = vsel %vm118, %v640, %v647
    %v649 = vsel %vm119, %v641, %v646
    %650 = vrot.lane.b32.xlu0 %v634, 15
    %v651 = vpop.permute.xlu0 %650
    %652 = vrot.lane.b32.xlu0 %v635, 15
    %v653 = vpop.permute.xlu0 %652
    %v654 = vsel %vm131, %v651, %v653
    %v655 = vsel %vm131, %v653, %v651
    %656 = vrot.lane.b32.xlu0 %v634, 127
    %v657 = vpop.permute.xlu0 %656
    %658 = vrot.lane.b32.xlu0 %v635, 127
    %v659 = vpop.permute.xlu0 %658
    %v660 = vsel %vm143, %v657, %v659
    %v661 = vsel %vm143, %v659, %v657
    %v662 = vsel %vm148, %v655, %v660
    %v663 = vsel %vm149, %v654, %v661
    %664 = vrot.lane.b32.xlu0 %v648, 16
    %v665 = vpop.permute.xlu0 %664
    %666 = vrot.lane.b32.xlu0 %v649, 16
    %v667 = vpop.permute.xlu0 %666
    %v668 = vsel %vm156, %v665, %v667
    %v669 = vsel %vm156, %v667, %v665
    %670 = vst [vmem:[#allocation2] sm:$0xf] %v669
    %671 = vst [vmem:[#allocation2 + $0x8] sm:$0xf] %v668
    %672 = vrot.lane.b32.xlu0 %v634, 16
    %v673 = vpop.permute.xlu0 %672
    %674 = vrot.lane.b32.xlu0 %v635, 16
    %v675 = vpop.permute.xlu0 %674
    %v676 = vsel %vm156, %v673, %v675
    %v677 = vsel %vm156, %v675, %v673
    %678 = vst [vmem:[#allocation2 + $0x10] sm:$0xf] %v677
    %679 = vst [vmem:[#allocation2 + $0x18] sm:$0xf] %v676
    %680 = vrot.lane.b32.xlu0 %v662, 16
    %v681 = vpop.permute.xlu0 %680
    %682 = vrot.lane.b32.xlu0 %v663, 16
    %v683 = vpop.permute.xlu0 %682
    %v684 = vsel %vm156, %v681, %v683
    %v685 = vsel %vm156, %v683, %v681
    %686 = vst [vmem:[#allocation2 + $0x20] sm:$0xf] %v685
    %687 = vst [vmem:[#allocation2 + $0x28] sm:$0xf] %v684
    %688 = vst [vmem:[#allocation2 + $0x30] sm:$0xf] %v648
    %689 = vst [vmem:[#allocation2 + $0x38] sm:$0xf] %v649
    %690 = vst [vmem:[#allocation2 + $0x40] sm:$0xf] %v634
    %691 = vst [vmem:[#allocation2 + $0x48] sm:$0xf] %v635
    %692 = vst [vmem:[#allocation2 + $0x50] sm:$0xf] %v662
    %693 = vst [vmem:[#allocation2 + $0x58] sm:$0xf] %v663
    %694 = vrot.lane.b32.xlu0 %v648, 112
    %v695 = vpop.permute.xlu0 %694
    %696 = vrot.lane.b32.xlu0 %v649, 112
    %v697 = vpop.permute.xlu0 %696
    %v698 = vsel %vm197, %v695, %v697
    %v699 = vsel %vm197, %v697, %v695
    %700 = vst [vmem:[#allocation2 + $0x60] sm:$0xf] %v698
    %701 = vst [vmem:[#allocation2 + $0x68] sm:$0xf] %v699
    %702 = vrot.lane.b32.xlu0 %v634, 112
    %v703 = vpop.permute.xlu0 %702
    %704 = vrot.lane.b32.xlu0 %v635, 112
    %v705 = vpop.permute.xlu0 %704
    %v706 = vsel %vm197, %v703, %v705
    %v707 = vsel %vm197, %v705, %v703
    %708 = vst [vmem:[#allocation2 + $0x70] sm:$0xf] %v706
    %709 = vst [vmem:[#allocation2 + $0x78] sm:$0xf] %v707
    %710 = vrot.lane.b32.xlu0 %v662, 112
    %v711 = vpop.permute.xlu0 %710
    %712 = vrot.lane.b32.xlu0 %v663, 112
    %v713 = vpop.permute.xlu0 %712
    %v714 = vsel %vm197, %v711, %v713
    %v715 = vsel %vm197, %v713, %v711
    %716 = vst [vmem:[#allocation2 + $0x80] sm:$0xf] %v714
    %717 = vst [vmem:[#allocation2 + $0x88] sm:$0xf] %v715
    %v718 = vld [vmem:[#allocation2] sm:$0xff]
    %v719 = vld [vmem:[#allocation2 + $0x8] sm:$0xff]
    %v720 = vld [vmem:[#allocation2 + $0x10] sm:$0xff]
    %v721 = vld [vmem:[#allocation2 + $0x18] sm:$0xff]
    %v722 = vld [vmem:[#allocation2 + $0x20] sm:$0xff]
    %v723 = vld [vmem:[#allocation2 + $0x28] sm:$0xff]
    %v724 = vld [vmem:[#allocation2 + $0x30] sm:$0xff]
    %v725 = vld [vmem:[#allocation2 + $0x38] sm:$0xff]
    %v726 = vld [vmem:[#allocation2 + $0x40] sm:$0xff]
    %v727 = vld [vmem:[#allocation2 + $0x48] sm:$0xff]
    %v728 = vld [vmem:[#allocation2 + $0x50] sm:$0xff]
    %v729 = vld [vmem:[#allocation2 + $0x58] sm:$0xff]
    %v730 = vld [vmem:[#allocation2 + $0x60] sm:$0xff]
    %v731 = vld [vmem:[#allocation2 + $0x68] sm:$0xff]
    %v732 = vld [vmem:[#allocation2 + $0x70] sm:$0xff]
    %v733 = vld [vmem:[#allocation2 + $0x78] sm:$0xff]
    %v734 = vld [vmem:[#allocation2 + $0x80] sm:$0xff]
    %v735 = vld [vmem:[#allocation2 + $0x88] sm:$0xff]
    %736 = vmatpush.msra.mxu0 0.0
    %737 = vmatpush.msra.mxu0 0.0
    %738 = vmatpush.msra.mxu0 0.0
    %739 = vmatpush.msra.mxu0 0.0
    %740 = vmatpush.msra.mxu0 0.0
    %741 = vmatpush.msra.mxu0 0.0
    %742 = vmatpush.msra.mxu0 0.0
    %743 = vmatpush.msra.mxu0 %v734
    %744 = vmatpush.msra.mxu0 %v732
    %745 = vmatpush.msra.mxu0 %v730
    %746 = vmatpush.msra.mxu0 %v728
    %747 = vmatpush.msra.mxu0 %v726
    %748 = vmatpush.msra.mxu0 %v724
    %749 = vmatpush.msra.mxu0 %v722
    %750 = vmatpush.msra.mxu0 %v720
    %751 = vmatpush.msra.mxu0 %v718
    %752 = vmatmul.f32.gmra.mxu0 %v398
    %v753 = vpop.f32.mrf.mxu0
    %v754 = vadd.f32 %v395, %v753
    %755 = vdwg.mxu0
    %756 = vmatpush.msra.mxu0 0.0
    %757 = vmatpush.msra.mxu0 0.0
    %758 = vmatpush.msra.mxu0 0.0
    %759 = vmatpush.msra.mxu0 0.0
    %760 = vmatpush.msra.mxu0 0.0
    %761 = vmatpush.msra.mxu0 0.0
    %762 = vmatpush.msra.mxu0 0.0
    %763 = vmatpush.msra.mxu0 %v735
    %764 = vmatpush.msra.mxu0 %v733
    %765 = vmatpush.msra.mxu0 %v731
    %766 = vmatpush.msra.mxu0 %v729
    %767 = vmatpush.msra.mxu0 %v727
    %768 = vmatpush.msra.mxu0 %v725
    %769 = vmatpush.msra.mxu0 %v723
    %770 = vmatpush.msra.mxu0 %v721
    %771 = vmatpush.msra.mxu0 %v719
    %772 = vmatmul.f32.gmra.mxu0 %v398
    %v773 = vpop.f32.mrf.mxu0
    %v774 = vadd.f32 %v395, %v773
    %775 = vdwg.mxu0
    %v776 = vmax.f32 %v754, 0.0
    %v777 = vmax.f32 %v774, 0.0
    %778 = vst [vmem:[#allocation1] ss:$2 sm:$0xff] %v457
    %v779 = vld.sshfl [vmem:[#allocation1] sm:$0xff pattern:$0x75316420]
    %v780 = vld.sshfl [vmem:[#allocation1 + $0x8] sm:$0xff pattern:$0x75316420]
    %v783 = vadd.f32 %v776, %v779
    %v784 = vadd.f32 %v777, %v780
    %v787 = vrot.slane %v784, 4
    %v788 = vsel %vm452, %v783, %v787
    %s790 = scalar_lea.vmem [#allocation6], 8
    %791 = vst [vmem:[%s790] sm:$0xff] %v788
    // Predicated region
    $region26: #{tpu_custom_call.1} parent=1 // pred_check
      _
    $region27: #{tpu_custom_call.1} parent=1 // pred_check_branch
      %793 = sbr.rel (0) target = $region29
    $region28: #{tpu_custom_call.1} parent=1 // pred_region
      %795 = vsyncadd [#allocation5], 0
      %s796 = sshll.u32 [#allocation6], 4
      %s797 = int_to_ptr.vmem [resolvable:$true] %s796
      %s798 = sshll.u32 %s5, 4
      %s799 = int_to_ptr.hbm [resolvable:$true] %s798
      %804 = dma.vmem_to_hbm [thread:$0]  %s797, 256, %s799, [#allocation5], 128, 128, 8
    $region29: #{tpu_custom_call.1} parent=1 // pred_fallthru
      _
    // Predicated region
    $region30: #{tpu_custom_call.1} parent=1 // pred_check
      _
    $region31: #{tpu_custom_call.1} parent=1 // pred_check_branch
      %806 = sbr.rel (0) target = $region33
    $region32: #{tpu_custom_call.1} parent=1 // pred_region
      %808 = dma.done [#allocation5], 256
    $region33: #{tpu_custom_call.1} parent=1 // pred_fallthru
      _
    %809 = vsyncpa [#allocation4], 1
    %810 = vsyncpa [#allocation5], 1

</llo_original>
